<compile_context>
chip_gen: v5e
topology: v5e:2x2
jax: 0.10.0
libtpu: 0.0.40
codegen_flags: <defaults>
</compile_context>

<pallas_src>
import functools
import math

import jax
import jax.numpy as jnp
from jax.experimental import pallas as pl
from jax.experimental.pallas import tpu as pltpu


def _label_smoothing_kernel(logits_ref, tgt_ref, mask_ref,
                            loss_part_ref, cnt_part_ref,
                            *, label_smoothing, n_valid_rows):
    i = pl.program_id(0)

    x = logits_ref[...].astype(jnp.float32)           # (tm, V)
    tm, v = x.shape

    # log_softmax pieces over the vocab (lane) axis
    m = jnp.max(x, axis=-1, keepdims=True)
    shifted = x - m                                    # (tm, V)
    lse = jnp.log(jnp.sum(jnp.exp(shifted), axis=-1, keepdims=True))  # (tm, 1)

    conf = 1.0 - label_smoothing
    eps = label_smoothing / (v - 1)                    # NOTE: requires V >= 2

    # C = conf*log(conf) + (V-1)*eps*log(eps), with x*log(x) -> 0 as x -> 0.
    c_const = 0.0
    if conf > 0.0:
        c_const += conf * math.log(conf)
    if eps > 0.0:
        c_const += (v - 1) * eps * math.log(eps)

    # logp at the target index via iota compare + lane-sum (no dense scatter).
    tgt = tgt_ref[...]                                 # (tm, 1) int32
    tgt = jnp.where(tgt < 0, 0, tgt)                   # assign_seq[assign_seq < 0] = 0
    col = jax.lax.broadcasted_iota(jnp.int32, (tm, v), 1)
    shifted_tgt = jnp.sum(jnp.where(col == tgt, shifted, 0.0),
                          axis=-1, keepdims=True)      # (tm, 1)
    logp_tgt = shifted_tgt - lse                       # (tm, 1)

    # sum_j logp_j = sum_j shifted_j - V * lse  (reuses what we already have)
    sum_logp = jnp.sum(shifted, axis=-1, keepdims=True) - v * lse    # (tm, 1)

    row_loss = c_const - (conf - eps) * logp_tgt - eps * sum_logp    # (tm, 1)

    # Validity of rows in the (possibly ragged) last block: the padded region
    # of the block contains undefined data, so zero it out with where-selects
    # (a plain mask multiply would propagate NaN).
    local = jax.lax.broadcasted_iota(jnp.int32, (tm, 1), 0)
    valid = (i * tm + local) < n_valid_rows            # (tm, 1) bool

    w = jnp.where(valid, mask_ref[...].astype(jnp.float32), 0.0)     # (tm, 1)
    contrib = jnp.where(valid, row_loss, 0.0) * w                    # (tm, 1)

    # Lane-dense per-block partials (unmasked full-tile stores); final
    # reduction happens in JAX, so the grid axis is fully parallel.
    loss_part_ref[...] = jnp.broadcast_to(jnp.sum(contrib), loss_part_ref.shape)
    cnt_part_ref[...] = jnp.broadcast_to(jnp.sum(w), cnt_part_ref.shape)


def label_smoothing_loss(logits, targets, *, label_smoothing, eos_id,
                         loss_weight, tm=None):
    """logits: (B, T, V) float32/bfloat16; targets: (B, T) int. Scalar loss."""
    B, T, V = logits.shape
    assert V >= 2, "label smoothing needs vocab size >= 2"
    assert 0.0 <= label_smoothing < 1.0

    # mask = cumsum(seq == eos_id) == 0, shifted right by one, leading column 1
    seq = targets
    m = jnp.cumsum((seq == eos_id).astype(jnp.int32), axis=-1) == 0
    mask = jnp.concatenate([jnp.ones((B, 1), dtype=m.dtype), m[:, :-1]], axis=1)

    logits2 = logits.reshape(-1, V)                    # no padding copy
    tgt = targets.reshape(-1, 1).astype(jnp.int32)
    msk = mask.reshape(-1, 1).astype(jnp.float32)
    N = logits2.shape[0]

    itemsize = jnp.dtype(logits.dtype).itemsize
    if tm is None:
        # ~10 MiB per logits buffer (x2 for double-buffering) — fits every
        # generation (v7x: 64 MiB physical VMEM) with room to spare.
        budget_bytes = 10 * 1024 * 1024
        tm = budget_bytes // max(V * itemsize, 1)
    tm = int(min(tm, 1024))
    tm = min(tm, ((N + 15) // 16) * 16)                # don't exceed row count
    tm = max(16, (tm // 16) * 16)                      # multiple of 16 (bf16 ok)

    grid = pl.cdiv(N, tm)

    kernel = functools.partial(_label_smoothing_kernel,
                               label_smoothing=float(label_smoothing),
                               n_valid_rows=N)

    loss_parts, cnt_parts = pl.pallas_call(
        kernel,
        out_shape=(jax.ShapeDtypeStruct((grid, 8, 128), jnp.float32),
                   jax.ShapeDtypeStruct((grid, 8, 128), jnp.float32)),
        grid_spec=pltpu.PrefetchScalarGridSpec(
            num_scalar_prefetch=0,
            grid=(grid,),
            in_specs=[
                pl.BlockSpec((tm, V), lambda i: (i, 0)),
                pl.BlockSpec((tm, 1), lambda i: (i, 0)),
                pl.BlockSpec((tm, 1), lambda i: (i, 0)),
            ],
            out_specs=[
                pl.BlockSpec((1, 8, 128), lambda i: (i, 0, 0)),
                pl.BlockSpec((1, 8, 128), lambda i: (i, 0, 0)),
            ],
        ),
        compiler_params=pltpu.CompilerParams(
            dimension_semantics=("parallel",),
            vmem_limit_bytes=48 * 1024 * 1024),
    )(logits2, tgt, msk)

    loss_sum = jnp.sum(loss_parts[:, 0, 0])
    mask_cnt = jnp.sum(cnt_parts[:, 0, 0])
    loss = loss_sum / jnp.maximum(mask_cnt, 1.0)       # masked mean (guarded)
    return loss * loss_weight


def _reference_loss(logits, targets, *, label_smoothing, eos_id, loss_weight):
    B, T, V = logits.shape
    seq = targets
    m = jnp.cumsum((seq == eos_id).astype(jnp.int32), axis=-1) == 0
    mask = jnp.concatenate([jnp.ones((B, 1), m.dtype), m[:, :-1]], axis=1)
    mask = mask.reshape(-1).astype(jnp.float32)

    logp = jax.nn.log_softmax(logits.reshape(-1, V).astype(jnp.float32), axis=-1)
    tgt = jnp.where(targets.reshape(-1) < 0, 0, targets.reshape(-1))
    conf = 1.0 - label_smoothing
    eps = label_smoothing / (V - 1)
    true_dist = jnp.full((logp.shape[0], V), eps, jnp.float32)
    true_dist = true_dist.at[jnp.arange(logp.shape[0]), tgt].set(conf)
    kl = jnp.where(true_dist > 0,
                   true_dist * (jnp.log(jnp.maximum(true_dist, 1e-30)) - logp),
                   0.0)
    row_loss = kl.sum(-1)
    return (row_loss * mask).sum() / mask.sum() * loss_weight


if __name__ == "__main__":
    key = jax.random.PRNGKey(0)
    B, T, V = 2, 8, 128
    label_smoothing = 0.1
    eos_id = 0
    loss_weight = 1.0

    k1, k2 = jax.random.split(key)
    logits = jax.random.normal(k1, (B, T, V), dtype=jnp.float32)
    targets = jax.random.randint(k2, (B, T), 0, V, dtype=jnp.int32)

    loss = label_smoothing_loss(
        logits, targets,
        label_smoothing=label_smoothing, eos_id=eos_id, loss_weight=loss_weight)
    loss = jax.block_until_ready(loss)

    ref = _reference_loss(
        logits, targets,
        label_smoothing=label_smoothing, eos_id=eos_id, loss_weight=loss_weight)

    assert jnp.allclose(loss, ref, rtol=1e-4, atol=1e-5), (loss, ref)
    print("KERNEL_OK")
</pallas_src>

<mosaic_0001>
module attributes {stable_mosaic.version = 11 : i64} {
  func.func @_label_smoothing_kernel(%arg0: i32, %arg1: memref<16x128xf32, #tpu.memory_space<vmem>>, %arg2: memref<16x1xi32, #tpu.memory_space<vmem>>, %arg3: memref<16x1xf32, #tpu.memory_space<vmem>>, %arg4: memref<1x8x128xf32, #tpu.memory_space<vmem>>, %arg5: memref<1x8x128xf32, #tpu.memory_space<vmem>>) attributes {dimension_semantics = [#tpu.dimension_semantics<parallel>], iteration_bounds = array<i64: 1>, scalar_prefetch = 0 : i64, scratch_operands = 0 : i64, tpu.core_type = #tpu.core_type<tc>, window_params = [{transform_indices = @transform_0, window_bounds = array<i64: 16, 128>}, {transform_indices = @transform_1, window_bounds = array<i64: 16, 1>}, {transform_indices = @transform_2, window_bounds = array<i64: 16, 1>}, {transform_indices = @transform_3, window_bounds = array<i64: 1, 8, 128>}, {transform_indices = @transform_4, window_bounds = array<i64: 1, 8, 128>}]} {
    %c0 = arith.constant 0 : index
    %c0_0 = arith.constant 0 : index
    %0 = vector.load %arg1[%c0, %c0_0] : memref<16x128xf32, #tpu.memory_space<vmem>>, vector<16x128xf32>
    %cst = arith.constant dense<0xFF800000> : vector<16xf32>
    %1 = vector.multi_reduction <maximumf>, %0, %cst [1] : vector<16x128xf32> to vector<16xf32>
    %2 = vector.shape_cast %1 : vector<16xf32> to vector<16x1xf32>
    %3 = vector.broadcast %2 : vector<16x1xf32> to vector<16x128xf32>
    %4 = arith.subf %0, %3 : vector<16x128xf32>
    %5 = math.exp %4 : vector<16x128xf32>
    %cst_1 = arith.constant dense<0.000000e+00> : vector<16xf32>
    %6 = vector.multi_reduction <add>, %5, %cst_1 [1] : vector<16x128xf32> to vector<16xf32>
    %7 = vector.shape_cast %6 : vector<16xf32> to vector<16x1xf32>
    %8 = math.log %7 : vector<16x1xf32>
    %c0_2 = arith.constant 0 : index
    %c0_3 = arith.constant 0 : index
    %9 = vector.load %arg2[%c0_2, %c0_3] : memref<16x1xi32, #tpu.memory_space<vmem>>, vector<16x1xi32>
    %c0_i32 = arith.constant 0 : i32
    %10 = vector.broadcast %c0_i32 : i32 to vector<16x1xi32>
    %11 = arith.cmpi slt, %9, %10 : vector<16x1xi32>
    %c0_i32_4 = arith.constant 0 : i32
    %12 = vector.broadcast %c0_i32_4 : i32 to vector<16x1xi32>
    %13 = arith.select %11, %12, %9 : vector<16x1xi1>, vector<16x1xi32>
    %14 = tpu.iota {dimensions = array<i32: 1>} : vector<16x128xi32>
    %15 = vector.broadcast %13 : vector<16x1xi32> to vector<16x128xi32>
    %16 = arith.cmpi eq, %14, %15 : vector<16x128xi32>
    %cst_5 = arith.constant 0.000000e+00 : f32
    %17 = vector.broadcast %cst_5 : f32 to vector<16x128xf32>
    %18 = arith.select %16, %4, %17 : vector<16x128xi1>, vector<16x128xf32>
    %cst_6 = arith.constant dense<0.000000e+00> : vector<16xf32>
    %19 = vector.multi_reduction <add>, %18, %cst_6 [1] : vector<16x128xf32> to vector<16xf32>
    %20 = vector.shape_cast %19 : vector<16xf32> to vector<16x1xf32>
    %21 = arith.subf %20, %8 : vector<16x1xf32>
    %cst_7 = arith.constant dense<0.000000e+00> : vector<16xf32>
    %22 = vector.multi_reduction <add>, %4, %cst_7 [1] : vector<16x128xf32> to vector<16xf32>
    %23 = vector.shape_cast %22 : vector<16xf32> to vector<16x1xf32>
    %cst_8 = arith.constant 1.280000e+02 : f32
    %24 = vector.broadcast %cst_8 : f32 to vector<16x1xf32>
    %25 = arith.mulf %24, %8 : vector<16x1xf32>
    %26 = arith.subf %23, %25 : vector<16x1xf32>
    %cst_9 = arith.constant 0.899212599 : f32
    %27 = vector.broadcast %cst_9 : f32 to vector<16x1xf32>
    %28 = arith.mulf %27, %21 : vector<16x1xf32>
    %cst_10 = arith.constant -0.809501707 : f32
    %29 = vector.broadcast %cst_10 : f32 to vector<16x1xf32>
    %30 = arith.subf %29, %28 : vector<16x1xf32>
    %cst_11 = arith.constant 7.87401571E-4 : f32
    %31 = vector.broadcast %cst_11 : f32 to vector<16x1xf32>
    %32 = arith.mulf %31, %26 : vector<16x1xf32>
    %33 = arith.subf %30, %32 : vector<16x1xf32>
    %34 = tpu.iota {dimensions = array<i32: 0>} : vector<16x1xi32>
    %c16_i32 = arith.constant 16 : i32
    %35 = arith.muli %arg0, %c16_i32 : i32
    %36 = vector.broadcast %35 : i32 to vector<16x1xi32>
    %37 = arith.addi %36, %34 : vector<16x1xi32>
    %c16_i32_12 = arith.constant 16 : i32
    %38 = vector.broadcast %c16_i32_12 : i32 to vector<16x1xi32>
    %39 = arith.cmpi slt, %37, %38 : vector<16x1xi32>
    %c0_13 = arith.constant 0 : index
    %c0_14 = arith.constant 0 : index
    %40 = vector.load %arg3[%c0_13, %c0_14] : memref<16x1xf32, #tpu.memory_space<vmem>>, vector<16x1xf32>
    %cst_15 = arith.constant 0.000000e+00 : f32
    %41 = vector.broadcast %cst_15 : f32 to vector<16x1xf32>
    %42 = arith.select %39, %40, %41 : vector<16x1xi1>, vector<16x1xf32>
    %cst_16 = arith.constant 0.000000e+00 : f32
    %43 = vector.broadcast %cst_16 : f32 to vector<16x1xf32>
    %44 = arith.select %39, %33, %43 : vector<16x1xi1>, vector<16x1xf32>
    %45 = arith.mulf %44, %42 : vector<16x1xf32>
    %46 = vector.shape_cast %45 : vector<16x1xf32> to vector<1x16x1xf32>
    %cst_17 = arith.constant dense<0.000000e+00> : vector<1xf32>
    %47 = vector.multi_reduction <add>, %46, %cst_17 [1, 2] : vector<1x16x1xf32> to vector<1xf32>
    %48 = vector.shape_cast %47 : vector<1xf32> to vector<1x1x1xf32>
    %49 = vector.extract %48[0, 0, 0] : f32 from vector<1x1x1xf32>
    %50 = vector.broadcast %49 : f32 to vector<1x8x128xf32>
    %c0_18 = arith.constant 0 : index
    %c0_19 = arith.constant 0 : index
    %c0_20 = arith.constant 0 : index
    %51 = vector.load %arg4[%c0_18, %c0_19, %c0_20] : memref<1x8x128xf32, #tpu.memory_space<vmem>>, vector<1x8x128xf32>
    tpu.vector_store %arg4[%c0_18, %c0_19, %c0_20], %50 {strides = array<i32>} : memref<1x8x128xf32, #tpu.memory_space<vmem>>, vector<1x8x128xf32>,
    %52 = vector.shape_cast %42 : vector<16x1xf32> to vector<1x16x1xf32>
    %cst_21 = arith.constant dense<0.000000e+00> : vector<1xf32>
    %53 = vector.multi_reduction <add>, %52, %cst_21 [1, 2] : vector<1x16x1xf32> to vector<1xf32>
    %54 = vector.shape_cast %53 : vector<1xf32> to vector<1x1x1xf32>
    %55 = vector.extract %54[0, 0, 0] : f32 from vector<1x1x1xf32>
    %56 = vector.broadcast %55 : f32 to vector<1x8x128xf32>
    %c0_22 = arith.constant 0 : index
    %c0_23 = arith.constant 0 : index
    %c0_24 = arith.constant 0 : index
    %57 = vector.load %arg5[%c0_22, %c0_23, %c0_24] : memref<1x8x128xf32, #tpu.memory_space<vmem>>, vector<1x8x128xf32>
    tpu.vector_store %arg5[%c0_22, %c0_23, %c0_24], %56 {strides = array<i32>} : memref<1x8x128xf32, #tpu.memory_space<vmem>>, vector<1x8x128xf32>,
    return
  }
  func.func @transform_0(%arg0: i32) -> (i32, i32) {
    %c0_i32 = arith.constant 0 : i32
    %c0_i32_0 = arith.constant 0 : i32
    return %arg0, %c0_i32 : i32, i32
  }
  func.func @transform_1(%arg0: i32) -> (i32, i32) {
    %c0_i32 = arith.constant 0 : i32
    %c0_i32_0 = arith.constant 0 : i32
    return %arg0, %c0_i32 : i32, i32
  }
  func.func @transform_2(%arg0: i32) -> (i32, i32) {
    %c0_i32 = arith.constant 0 : i32
    %c0_i32_0 = arith.constant 0 : i32
    return %arg0, %c0_i32 : i32, i32
  }
  func.func @transform_3(%arg0: i32) -> (i32, i32, i32) {
    %c0_i32 = arith.constant 0 : i32
    %c0_i32_0 = arith.constant 0 : i32
    %c0_i32_1 = arith.constant 0 : i32
    return %arg0, %c0_i32, %c0_i32_0 : i32, i32, i32
  }
  func.func @transform_4(%arg0: i32) -> (i32, i32, i32) {
    %c0_i32 = arith.constant 0 : i32
    %c0_i32_0 = arith.constant 0 : i32
    %c0_i32_1 = arith.constant 0 : i32
    return %arg0, %c0_i32, %c0_i32_0 : i32, i32, i32
  }
}

</mosaic_0001>

<llo_original>
// kernel: tpu_custom_call.1
$region0: #{tpu_custom_call.1}
  #allocation0 [shape = 'u32[]', space=smem, size = 0x4, offset = 0x4, fixed_abs, tag = 'smem constant byte address 0x4 - core index']
  #allocation1 [shape = 'u32[72,128]{1,0:T(1,128)}', space=vmem, size = 0x9000, scoped, tag = 'internal scratch']
  %s0 = inlined_call_operand.vmem [shape: f32[16,128], index: 0, kind: input, shape index: {}]
  %s1 = inlined_call_operand.vmem [shape: s32[16,1], index: 1, kind: input, shape index: {}]
  %s2 = inlined_call_operand.vmem [shape: f32[16,1], index: 2, kind: input, shape index: {}]
  %s3 = inlined_call_operand.hbm [shape: f32[1,8,128], index: 3, kind: output, shape index: {0}]
  %s4 = inlined_call_operand.hbm [shape: f32[1,8,128], index: 4, kind: output, shape index: {1}]
  %5 = xla_tuple %s3, %s4
  %s6 = sld [smem:[#allocation0]]
  $region30: #{tpu_custom_call.1} parent=0
    _
  %s8 = ssub.s32 1, %s6
  %s9 = scalar_select 0, %s8, %s6
  $region1: #{tpu_custom_call.1} parent=0
    #allocation2 [shape = 'u8[4096]{0}', space=vmem, size = 0x1000, scoped, tag = 'output window, operand 0, single buffered']
    #allocation3 [shape = 's32[1]{0}', space=sflag, size = 0x4, scoped, tag = 'scoped memory for tpu_custom_call.1']
    #allocation4 [shape = 'u8[4096]{0}', space=vmem, size = 0x1000, scoped, tag = 'output window, operand 1, single buffered']
    #allocation5 [shape = 's32[1]{0}', space=sflag, size = 0x4, scoped, tag = 'scoped memory for tpu_custom_call.1']
    %10 = vsyncpa [#allocation3], 0
    %11 = vsyncpa [#allocation5], 0
    // Predicated region
    $region2: #{tpu_custom_call.1} parent=1 // pred_check
      _
    $region3: #{tpu_custom_call.1} parent=1 // pred_check_branch
      %13 = sbr.rel (0) target = $region5
    $region4: #{tpu_custom_call.1} parent=1 // pred_region
      _
    $region5: #{tpu_custom_call.1} parent=1 // pred_fallthru
      _
    // Predicated region
    $region6: #{tpu_custom_call.1} parent=1 // pred_check
      _
    $region7: #{tpu_custom_call.1} parent=1 // pred_check_branch
      %15 = sbr.rel (0) target = $region9
    $region8: #{tpu_custom_call.1} parent=1 // pred_region
      _
    $region9: #{tpu_custom_call.1} parent=1 // pred_fallthru
      _
    // Predicated region
    $region10: #{tpu_custom_call.1} parent=1 // pred_check
      _
    $region11: #{tpu_custom_call.1} parent=1 // pred_check_branch
      %17 = sbr.rel (0) target = $region13
    $region12: #{tpu_custom_call.1} parent=1 // pred_region
      _
    $region13: #{tpu_custom_call.1} parent=1 // pred_fallthru
      _
    %v18 = vld [vmem:[%s0] sm:$0xff]
    %v19 = vld [vmem:[%s0 + $0x8] sm:$0xff]
    %20 = vmax.xlane.f32.xlu0 %v18
    %v21 = vpop.xlane.xlu0 %20
    %22 = vmax.xlane.f32.xlu0 %v19
    %v23 = vpop.xlane.xlu0 %22
    %v24 = vsub.f32 %v18, %v21
    %v25 = vsub.f32 %v19, %v23
    %v26 = vmul.f32 %v24, 1.442695
    %v27 = vpow.pop %v26
    %v28 = vmul.f32 %v25, 1.442695
    %v29 = vpow.pop %v28
    %30 = vadd.xlane.f32.xlu0 %v27
    %v31 = vpop.xlane.xlu0 %30
    %32 = vadd.xlane.f32.xlu0 %v29
    %v33 = vpop.xlane.xlu0 %32
    %v34 = vlog2.pop %v31
    %v35 = vmul.f32 %v34, 0.6931472
    %v36 = vlog2.pop %v33
    %v37 = vmul.f32 %v36, 0.6931472
    %v38 = vld [vmem:[%s1] sm:$0xff]
    %v39 = vld [vmem:[%s1 + $0x8] sm:$0xff]
    %vm40 = vcmp.lt.s32.totalorder %v38, 0
    %vm41 = vcmp.lt.s32.totalorder %v39, 0
    %v42 = vsel %vm40, 0, %v38
    %v43 = vsel %vm41, 0, %v39
    %v44 = vlaneseq
    %v45 = vand.u32 %v44, 127
    %46 = vset.pattern.permute.xlu0 0
    %47 = vperm.xlu0 %46, %v42
    %v48 = vpop.permute.xlu0 %47
    %49 = vset.pattern.permute.xlu0 0
    %50 = vperm.xlu0 %49, %v43
    %v51 = vpop.permute.xlu0 %50
    %vm52 = vcmp.eq.s32.totalorder %v45, %v48
    %vm53 = vcmp.eq.s32.totalorder %v45, %v51
    %v54 = vsel %vm52, %v24, 0.0
    %v55 = vsel %vm53, %v25, 0.0
    %56 = vadd.xlane.f32.xlu0 %v54
    %v57 = vpop.xlane.xlu0 %56
    %58 = vadd.xlane.f32.xlu0 %v55
    %v59 = vpop.xlane.xlu0 %58
    %v60 = vsub.f32 %v57, %v35
    %v61 = vsub.f32 %v59, %v37
    %62 = vadd.xlane.f32.xlu0 %v24
    %v63 = vpop.xlane.xlu0 %62
    %64 = vadd.xlane.f32.xlu0 %v25
    %v65 = vpop.xlane.xlu0 %64
    %v66 = vmul.f32 %v35, 128.0
    %v67 = vmul.f32 %v37, 128.0
    %v68 = vsub.f32 %v63, %v66
    %v69 = vsub.f32 %v65, %v67
    %v70 = vmul.f32 %v60, 0.8992126
    %v71 = vmul.f32 %v61, 0.8992126
    %v72 = vsub.f32 -0.8095017, %v70
    %v73 = vsub.f32 -0.8095017, %v71
    %v74 = vmul.f32 %v68, 0.0007874016
    %v75 = vmul.f32 %v69, 0.0007874016
    %v76 = vsub.f32 %v72, %v74
    %v77 = vsub.f32 %v73, %v75
    %v78 = vlaneseq
    %v79 = vshrl.u32 %v78, 7
    %v80 = vadd.s32 %v79, 8
    %s81 = smul.u32 0, 16
    %v82 = vstv %s81
    %v83 = vadd.s32 %v82, %v79
    %v84 = vadd.s32 %v82, %v80
    %vm85 = vcmp.lt.s32.totalorder %v83, 16
    %vm86 = vcmp.lt.s32.totalorder %v84, 16
    %v87 = vld [vmem:[%s2] sm:$0xff]
    %v88 = vld [vmem:[%s2 + $0x8] sm:$0xff]
    %v89 = vsel %vm85, %v87, 0.0
    %v90 = vsel %vm86, %v88, 0.0
    %v91 = vsel %vm85, %v76, 0.0
    %v92 = vsel %vm86, %v77, 0.0
    %v93 = vmul.f32 %v91, %v89
    %v94 = vmul.f32 %v92, %v90
    %vm95 = vcmask 7168
    %v96 = vsel %vm95, %v93, 0.0
    %v97 = vsel %vm95, %v94, 0.0
    %v98 = vadd.f32 %v96, %v97
    %99 = vadd.xlane.f32.xlu0 %v98
    %v100 = vpop.xlane.xlu0 %99
    %v101 = vrot.slane %v100, 4
    %v102 = vadd.f32 %v100, %v101
    %v103 = vrot.slane %v102, 2
    %v104 = vadd.f32 %v102, %v103
    %v105 = vrot.slane %v104, 1
    %v106 = vadd.f32 %v104, %v105
    %s107 = vtos %v106
    %v108 = vstv %s107
    %109 = vst [vmem:[#allocation2] sm:$0xff] %v108
    %v110 = vsel %vm95, %v89, 0.0
    %v111 = vsel %vm95, %v90, 0.0
    %v112 = vadd.f32 %v110, %v111
    %113 = vadd.xlane.f32.xlu0 %v112
    %v114 = vpop.xlane.xlu0 %113
    %v115 = vrot.slane %v114, 4
    %v116 = vadd.f32 %v114, %v115
    %v117 = vrot.slane %v116, 2
    %v118 = vadd.f32 %v116, %v117
    %v119 = vrot.slane %v118, 1
    %v120 = vadd.f32 %v118, %v119
    %s121 = vtos %v120
    %v122 = vstv %s121
    %123 = vst [vmem:[#allocation4] sm:$0xff] %v122
    // Predicated region
    $region14: #{tpu_custom_call.1} parent=1 // pred_check
      _
    $region15: #{tpu_custom_call.1} parent=1 // pred_check_branch
      %125 = sbr.rel (0) target = $region17
    $region16: #{tpu_custom_call.1} parent=1 // pred_region
      %127 = vsyncadd [#allocation3], 0
      %s129 = sshll.u32 [#allocation2], 4
      %s130 = int_to_ptr.vmem [resolvable:$true] %s129
      %s131 = sshll.u32 %s3, 4
      %s132 = int_to_ptr.hbm [resolvable:$true] %s131
      %134 = dma.vmem_to_hbm [thread:$0]  %s130, 128, %s132, [#allocation3]
    $region17: #{tpu_custom_call.1} parent=1 // pred_fallthru
      _
    // Predicated region
    $region18: #{tpu_custom_call.1} parent=1 // pred_check
      _
    $region19: #{tpu_custom_call.1} parent=1 // pred_check_branch
      %136 = sbr.rel (0) target = $region21
    $region20: #{tpu_custom_call.1} parent=1 // pred_region
      %138 = vsyncadd [#allocation5], 0
      %s140 = sshll.u32 [#allocation4], 4
      %s141 = int_to_ptr.vmem [resolvable:$true] %s140
      %s142 = sshll.u32 %s4, 4
      %s143 = int_to_ptr.hbm [resolvable:$true] %s142
      %145 = dma.vmem_to_hbm [thread:$0]  %s141, 128, %s143, [#allocation5]
    $region21: #{tpu_custom_call.1} parent=1 // pred_fallthru
      _
    // Predicated region
    $region22: #{tpu_custom_call.1} parent=1 // pred_check
      _
    $region23: #{tpu_custom_call.1} parent=1 // pred_check_branch
      %147 = sbr.rel (0) target = $region25
    $region24: #{tpu_custom_call.1} parent=1 // pred_region
      %149 = dma.done [#allocation3], 128
    $region25: #{tpu_custom_call.1} parent=1 // pred_fallthru
      _
    // Predicated region
    $region26: #{tpu_custom_call.1} parent=1 // pred_check
      _
    $region27: #{tpu_custom_call.1} parent=1 // pred_check_branch
      %151 = sbr.rel (0) target = $region29
    $region28: #{tpu_custom_call.1} parent=1 // pred_region
      %153 = dma.done [#allocation5], 128
    $region29: #{tpu_custom_call.1} parent=1 // pred_fallthru
      _
    %154 = vsyncpa [#allocation3], 1
    %155 = vsyncpa [#allocation5], 1

</llo_original>
